<compile_context>
chip_gen: v7x
topology: tpu7x:2x2x1
jax: 0.10.0
libtpu: 0.0.40
codegen_flags: <defaults>
</compile_context>

<pallas_src>
import functools

import jax
import jax.numpy as jnp
from jax import lax
from jax.experimental import pallas as pl
from jax.experimental.pallas import tpu as pltpu

_SQRT_HALF = 0.7071067811865476  # 1/sqrt(2)
_LANE = 128


def _gelu(x):
    # exact (erf-based) GELU, matching nn.GELU() default
    return 0.5 * x * (1.0 + lax.erf(x * _SQRT_HALF))


def _round_up(n, m):
    return ((n + m - 1) // m) * m


def _tom_kernel(
    x_ref,      # [TB, d_in_p]   concatenated + zero-padded inputs
    w1_ref,     # [d_in_p, h4]   zero-row-padded W1
    w2_ref,     # [h4, d_out_p]  zero-col-padded W2
    b_ref,      # [1, h4 + d_out_p]  packed biases (b1 | b2 padded)
    out_ref,    # [TB, d_out_p]  lane-dense output slab
    *, h4, k_int,
):
    # ---- Linear #1 (single MXU matmul, K already padded to a lane-dense width) ----
    h = jnp.dot(x_ref[...], w1_ref[...], preferred_element_type=jnp.float32)
    h = _gelu(h + b_ref[:, 0:h4])

    # ---- Linear #2 (lane-dense N = d_out_p) ----
    out = jnp.dot(h, w2_ref[...], preferred_element_type=jnp.float32) + b_ref[:, h4:]

    # ---- softmax over the first k_int columns only, done full-width via a lane
    #      mask so the store stays a single unmasked full-slab vst ----
    col = lax.broadcasted_iota(jnp.int32, out.shape, 1)
    is_int = col < k_int
    logits = jnp.where(is_int, out, -jnp.inf)
    m = jnp.max(logits, axis=-1, keepdims=True)
    e = jnp.exp(logits - m)
    denom = jnp.sum(e, axis=-1, keepdims=True)
    sm = e * pl.reciprocal(denom, approx=True)   # EUP divide
    out_ref[...] = jnp.where(is_int, sm, out)


def tom_forward(initial_states, result_states, beliefs, action_emb, params, *,
                num_intention, block_b=None):
    B = initial_states.shape[0]
    w1p, w2p, b_packed = params["w1_padded"], params["w2_padded"], params["b_packed"]
    d_in_p, h4 = w1p.shape
    d_out_p = w2p.shape[1]
    d_out = params["d_out"]
    d_in = params["d_in"]

    # Single concatenated, lane-padded input operand (fused by XLA; ~KBs of data).
    x = jnp.concatenate(
        [initial_states, result_states, beliefs, action_emb], axis=1)
    if d_in_p > d_in:
        x = jnp.pad(x, ((0, 0), (0, d_in_p - d_in)))

    # grid=1 (block_b = B) unless the caller explicitly tiles a large batch.
    if block_b is None:
        block_b = B
    assert B % block_b == 0 and (block_b % 8 == 0 or block_b == B)
    grid = (B // block_b,)
    # Only ask for megacore sharding when there is real per-core work.
    semantics = ("parallel",) if grid[0] > 1 else ("arbitrary",)

    kernel = functools.partial(_tom_kernel, h4=h4, k_int=num_intention)

    flops = 2 * B * (d_in_p * h4 + h4 * d_out_p)
    transcendentals = B * (h4 + num_intention)
    bytes_accessed = 4 * (B * (d_in_p + d_out_p)
                          + d_in_p * h4 + h4 * d_out_p + h4 + d_out_p)
    cost = pl.CostEstimate(flops=flops, transcendentals=transcendentals,
                           bytes_accessed=bytes_accessed)

    out = pl.pallas_call(
        kernel,
        grid=grid,
        in_specs=[
            pl.BlockSpec((block_b, d_in_p), lambda i: (i, 0)),
            pl.BlockSpec((d_in_p, h4), lambda i: (0, 0)),
            pl.BlockSpec((h4, d_out_p), lambda i: (0, 0)),
            pl.BlockSpec((1, h4 + d_out_p), lambda i: (0, 0)),
        ],
        out_specs=pl.BlockSpec((block_b, d_out_p), lambda i: (i, 0)),
        out_shape=jax.ShapeDtypeStruct((B, d_out_p), jnp.float32),
        compiler_params=pltpu.CompilerParams(dimension_semantics=semantics),
        cost_estimate=cost,
    )(x, w1p, w2p, b_packed)

    out = out[:, :d_out]
    intention = out[:, :num_intention]
    pred_public_belief = out[:, num_intention:]
    return intention, pred_public_belief


def make_params(key, emb_dim_state, emb_dim_belief, emb_dim_private_belief,
                num_moves, num_intention, hidden_dim_tom):
    d_in = 2 * emb_dim_state + emb_dim_belief + num_moves
    h4 = 4 * hidden_dim_tom
    d_out = num_intention + emb_dim_belief - emb_dim_private_belief
    k = jax.random.split(key, 4)
    w1 = jax.random.normal(k[0], (d_in, h4), jnp.float32) * (1.0 / jnp.sqrt(d_in))
    b1 = jax.random.normal(k[1], (1, h4), jnp.float32) * 0.01
    w2 = jax.random.normal(k[2], (h4, d_out), jnp.float32) * (1.0 / jnp.sqrt(h4))
    b2 = jax.random.normal(k[3], (1, d_out), jnp.float32) * 0.01

    # One-time param prep (not per-call wrapper work):
    #  * pad W1 rows to a lane-dense K so the kernel runs ONE matmul on the
    #    concatenated input (zero rows contribute nothing),
    #  * pad W2 cols / b2 lanes to 128 for an unmasked full-width output store,
    #  * pack the two bias rows into one lane-contiguous operand (one DMA).
    d_in_p = _round_up(d_in, _LANE)
    d_out_p = _round_up(d_out, _LANE)
    w1_padded = jnp.zeros((d_in_p, h4), jnp.float32).at[:d_in, :].set(w1)
    w2_padded = jnp.zeros((h4, d_out_p), jnp.float32).at[:, :d_out].set(w2)
    b2_padded = jnp.zeros((1, d_out_p), jnp.float32).at[:, :d_out].set(b2)
    b_packed = jnp.concatenate([b1, b2_padded], axis=1)

    # TODO(synk): for v6e/v7x throughput at large B, cast w1_padded/w2_padded to
    # bfloat16 (keep f32 accumulation) and relax test tolerances accordingly.
    return {"w1": w1, "b1": b1, "w2": w2, "b2": b2,
            "w1_padded": w1_padded, "w2_padded": w2_padded, "b_packed": b_packed,
            "d_in": d_in, "d_out": d_out}


def tom_forward_ref(s0, s1, bel, act, p, num_intention):
    # pure-JAX reference mirroring the PyTorch module
    x = jnp.concatenate([s0, s1, bel, act], axis=1)
    out = _gelu(x @ p["w1"] + p["b1"]) @ p["w2"] + p["b2"]
    intention = jax.nn.softmax(out[:, :num_intention], axis=1)
    return intention, out[:, num_intention:]


if __name__ == "__main__":
    # small shapes consistent with the module's forward
    emb_dim_state = 16
    emb_dim_belief = 16
    emb_dim_private_belief = 8
    num_moves = 8
    num_intention = 8
    hidden_dim_tom = 32          # -> hidden width 128
    batch = 64

    key = jax.random.PRNGKey(0)
    ks = jax.random.split(key, 5)
    initial_states = jax.random.normal(ks[0], (batch, emb_dim_state), jnp.float32)
    result_states = jax.random.normal(ks[1], (batch, emb_dim_state), jnp.float32)
    beliefs = jax.random.normal(ks[2], (batch, emb_dim_belief), jnp.float32)
    action_idx = jax.random.randint(ks[3], (batch,), 0, num_moves)
    action_emb = jax.nn.one_hot(action_idx, num_moves, dtype=jnp.float32)

    params = make_params(ks[4], emb_dim_state, emb_dim_belief, emb_dim_private_belief,
                         num_moves, num_intention, hidden_dim_tom)

    # grid=1 (block_b defaults to B) — the whole problem is a few tens of KB.
    intention, pred_public_belief = tom_forward(
        initial_states, result_states, beliefs, action_emb, params,
        num_intention=num_intention)
    intention = jax.block_until_ready(intention)
    pred_public_belief = jax.block_until_ready(pred_public_belief)

    i_ref, b_ref_out = tom_forward_ref(initial_states, result_states, beliefs,
                                       action_emb, params, num_intention)
    # intention uses the approximate (EUP) reciprocal in the softmax -> slightly
    # looser tolerance; pred_public_belief path is exact f32.
    assert jnp.allclose(intention, i_ref, atol=2e-3, rtol=2e-3)
    assert jnp.allclose(pred_public_belief, b_ref_out, atol=1e-4, rtol=1e-4)

    print("KERNEL_OK")
</pallas_src>

<mosaic_0001>
module attributes {stable_mosaic.version = 11 : i64} {
  func.func @_tom_kernel(%arg0: i32, %arg1: memref<64x128xf32, #tpu.memory_space<vmem>>, %arg2: memref<128x128xf32, #tpu.memory_space<vmem>>, %arg3: memref<128x128xf32, #tpu.memory_space<vmem>>, %arg4: memref<1x256xf32, #tpu.memory_space<vmem>>, %arg5: memref<64x128xf32, #tpu.memory_space<vmem>>) attributes {dimension_semantics = [#tpu.dimension_semantics<arbitrary>], iteration_bounds = array<i64: 1>, scalar_prefetch = 0 : i64, scratch_operands = 0 : i64, tpu.core_type = #tpu.core_type<tc>, window_params = [{transform_indices = @transform_0, window_bounds = array<i64: 64, 128>}, {pipeline_mode = #tpu.pipeline_mode<synchronous>, transform_indices = @transform_1, window_bounds = array<i64: 128, 128>}, {pipeline_mode = #tpu.pipeline_mode<synchronous>, transform_indices = @transform_2, window_bounds = array<i64: 128, 128>}, {pipeline_mode = #tpu.pipeline_mode<synchronous>, transform_indices = @transform_3, window_bounds = array<i64: 1, 256>}, {transform_indices = @transform_4, window_bounds = array<i64: 64, 128>}]} {
    %c0 = arith.constant 0 : index
    %c0_0 = arith.constant 0 : index
    %0 = vector.load %arg1[%c0, %c0_0] : memref<64x128xf32, #tpu.memory_space<vmem>>, vector<64x128xf32>
    %c0_1 = arith.constant 0 : index
    %c0_2 = arith.constant 0 : index
    %1 = vector.load %arg2[%c0_1, %c0_2] : memref<128x128xf32, #tpu.memory_space<vmem>>, vector<128x128xf32>
    %cst = arith.constant dense<0.000000e+00> : vector<64x128xf32>
    %2 = tpu.matmul %0, %1, %cst {dimension_numbers = #tpu.dot_dimension_numbers<[1], [0], [0], [1], [0, 0, 1, 1], [], []>} : vector<64x128xf32>, vector<128x128xf32>, vector<64x128xf32> -> vector<64x128xf32>
    %c0_3 = arith.constant 0 : index
    %c0_4 = arith.constant 0 : index
    %3 = vector.load %arg4[%c0_3, %c0_4] : memref<1x256xf32, #tpu.memory_space<vmem>>, vector<1x128xf32>
    %4 = vector.broadcast %3 : vector<1x128xf32> to vector<64x128xf32>
    %5 = arith.addf %2, %4 : vector<64x128xf32>
    %cst_5 = arith.constant 5.000000e-01 : f32
    %6 = vector.broadcast %cst_5 : f32 to vector<64x128xf32>
    %7 = arith.mulf %6, %5 : vector<64x128xf32>
    %cst_6 = arith.constant 0.707106769 : f32
    %8 = vector.broadcast %cst_6 : f32 to vector<64x128xf32>
    %9 = arith.mulf %5, %8 : vector<64x128xf32>
    %10 = math.erf %9 : vector<64x128xf32>
    %cst_7 = arith.constant 1.000000e+00 : f32
    %11 = vector.broadcast %cst_7 : f32 to vector<64x128xf32>
    %12 = arith.addf %11, %10 : vector<64x128xf32>
    %13 = arith.mulf %7, %12 : vector<64x128xf32>
    %c0_8 = arith.constant 0 : index
    %c0_9 = arith.constant 0 : index
    %14 = vector.load %arg3[%c0_8, %c0_9] : memref<128x128xf32, #tpu.memory_space<vmem>>, vector<128x128xf32>
    %cst_10 = arith.constant dense<0.000000e+00> : vector<64x128xf32>
    %15 = tpu.matmul %13, %14, %cst_10 {dimension_numbers = #tpu.dot_dimension_numbers<[1], [0], [0], [1], [0, 0, 1, 1], [], []>} : vector<64x128xf32>, vector<128x128xf32>, vector<64x128xf32> -> vector<64x128xf32>
    %c0_11 = arith.constant 0 : index
    %c128 = arith.constant 128 : index
    %16 = vector.load %arg4[%c0_11, %c128] : memref<1x256xf32, #tpu.memory_space<vmem>>, vector<1x128xf32>
    %17 = vector.broadcast %16 : vector<1x128xf32> to vector<64x128xf32>
    %18 = arith.addf %15, %17 : vector<64x128xf32>
    %19 = tpu.iota {dimensions = array<i32: 1>} : vector<64x128xi32>
    %c8_i32 = arith.constant 8 : i32
    %20 = vector.broadcast %c8_i32 : i32 to vector<64x128xi32>
    %21 = arith.cmpi slt, %19, %20 : vector<64x128xi32>
    %cst_12 = arith.constant 0xFF800000 : f32
    %22 = vector.broadcast %cst_12 : f32 to vector<64x128xf32>
    %23 = arith.select %21, %18, %22 : vector<64x128xi1>, vector<64x128xf32>
    %cst_13 = arith.constant dense<0xFF800000> : vector<64xf32>
    %24 = vector.multi_reduction <maximumf>, %23, %cst_13 [1] : vector<64x128xf32> to vector<64xf32>
    %25 = vector.shape_cast %24 : vector<64xf32> to vector<64x1xf32>
    %26 = vector.broadcast %25 : vector<64x1xf32> to vector<64x128xf32>
    %27 = arith.subf %23, %26 : vector<64x128xf32>
    %28 = math.exp %27 : vector<64x128xf32>
    %cst_14 = arith.constant dense<0.000000e+00> : vector<64xf32>
    %29 = vector.multi_reduction <add>, %28, %cst_14 [1] : vector<64x128xf32> to vector<64xf32>
    %30 = vector.shape_cast %29 : vector<64xf32> to vector<64x1xf32>
    %31 = tpu.reciprocal %30 {approx = true} : vector<64x1xf32> -> vector<64x1xf32>
    %32 = vector.broadcast %31 : vector<64x1xf32> to vector<64x128xf32>
    %33 = arith.mulf %28, %32 : vector<64x128xf32>
    %34 = arith.select %21, %33, %18 : vector<64x128xi1>, vector<64x128xf32>
    %c0_15 = arith.constant 0 : index
    %c0_16 = arith.constant 0 : index
    %35 = vector.load %arg5[%c0_15, %c0_16] : memref<64x128xf32, #tpu.memory_space<vmem>>, vector<64x128xf32>
    tpu.vector_store %arg5[%c0_15, %c0_16], %34 {strides = array<i32>} : memref<64x128xf32, #tpu.memory_space<vmem>>, vector<64x128xf32>,
    return
  }
  func.func @transform_0(%arg0: i32) -> (i32, i32) {
    %c0_i32 = arith.constant 0 : i32
    %c0_i32_0 = arith.constant 0 : i32
    return %arg0, %c0_i32 : i32, i32
  }
  func.func @transform_1(%arg0: i32) -> (i32, i32) {
    %c0_i32 = arith.constant 0 : i32
    %c0_i32_0 = arith.constant 0 : i32
    %c0_i32_1 = arith.constant 0 : i32
    return %c0_i32, %c0_i32_0 : i32, i32
  }
  func.func @transform_2(%arg0: i32) -> (i32, i32) {
    %c0_i32 = arith.constant 0 : i32
    %c0_i32_0 = arith.constant 0 : i32
    %c0_i32_1 = arith.constant 0 : i32
    return %c0_i32, %c0_i32_0 : i32, i32
  }
  func.func @transform_3(%arg0: i32) -> (i32, i32) {
    %c0_i32 = arith.constant 0 : i32
    %c0_i32_0 = arith.constant 0 : i32
    %c0_i32_1 = arith.constant 0 : i32
    return %c0_i32, %c0_i32_0 : i32, i32
  }
  func.func @transform_4(%arg0: i32) -> (i32, i32) {
    %c0_i32 = arith.constant 0 : i32
    %c0_i32_0 = arith.constant 0 : i32
    return %arg0, %c0_i32 : i32, i32
  }
}

</mosaic_0001>

<llo_original>
// kernel: tpu_custom_call.1
$region0: #{tpu_custom_call.1}
  #allocation0 [shape = 'u32[]', space=smem, size = 0x4, offset = 0x4, fixed_abs, tag = 'smem constant byte address 0x4 - core index']
  #allocation1 [shape = 'u32[144,128]{1,0:T(1,128)}', space=vmem, size = 0x12000, scoped, tag = 'internal scratch']
  %s0 = inlined_call_operand.hbm [shape: f32[64,128], index: 0, kind: input, shape index: {}]
  %s1 = inlined_call_operand.hbm [shape: f32[128,128], index: 1, kind: input, shape index: {}]
  %s2 = inlined_call_operand.hbm [shape: f32[128,128], index: 2, kind: input, shape index: {}]
  %s3 = inlined_call_operand.vmem [shape: f32[1,256], index: 3, kind: input, shape index: {}]
  %s4 = inlined_call_operand.hbm [shape: f32[64,128], index: 4, kind: output, shape index: {}]
  %s5 = sld [smem:[#allocation0]]
  $region38: #{tpu_custom_call.1} parent=0
    _
  %s7 = ssub.s32 1, %s5
  %s8 = scalar_select 0, %s7, %s5
  $region1: #{tpu_custom_call.1} parent=0
    #allocation2 [shape = 'u8[32768]{0}', space=vmem, size = 0x8000, scoped, tag = 'input window, operand 0, single buffered']
    #allocation3 [shape = 's32[1]{0}', space=sflag, size = 0x4, scoped, tag = 'scoped memory for tpu_custom_call.1']
    #allocation4 [shape = 's32[1]{0}', space=sflag, size = 0x4, scoped, tag = 'scoped memory for tpu_custom_call.1']
    #allocation5 [shape = 'u8[65536]{0}', space=vmem, size = 0x10000, scoped, tag = 'input window, operand 1, single buffered']
    #allocation6 [shape = 's32[1]{0}', space=sflag, size = 0x4, scoped, tag = 'scoped memory for tpu_custom_call.1']
    #allocation7 [shape = 'u8[65536]{0}', space=vmem, size = 0x10000, scoped, tag = 'input window, operand 2, single buffered']
    #allocation8 [shape = 'u8[32768]{0}', space=vmem, size = 0x8000, scoped, tag = 'output window, operand 0, single buffered']
    %9 = vsyncpa [#allocation3], 0
    %10 = vsyncpa [#allocation6], 0
    %11 = vsyncpa [#allocation4], 0
    // Predicated region
    $region2: #{tpu_custom_call.1} parent=1 // pred_check
      _
    $region3: #{tpu_custom_call.1} parent=1 // pred_check_branch
      %13 = sbr.rel (0) target = $region5
    $region4: #{tpu_custom_call.1} parent=1 // pred_region
      %s15 = ssub.s32 1024, 1024
      %16 = vsyncadd [#allocation3], %s15
      %s17 = sshll.u32 [#allocation2], 4
      %s18 = int_to_ptr.vmem [resolvable:$true] %s17
      %23 = dma.hbm_to_vmem [thread:$0]  %s0, 1024, %s18, [#allocation3], 128, 128, 8
    $region5: #{tpu_custom_call.1} parent=1 // pred_fallthru
      _
    // Predicated region
    $region6: #{tpu_custom_call.1} parent=1 // pred_check
      _
    $region7: #{tpu_custom_call.1} parent=1 // pred_check_branch
      %25 = sbr.rel (0) target = $region9
    $region8: #{tpu_custom_call.1} parent=1 // pred_region
      %s27 = ssub.s32 2048, 2048
      %28 = vsyncadd [#allocation6], %s27
      %s29 = sshll.u32 [#allocation5], 4
      %s30 = int_to_ptr.vmem [resolvable:$true] %s29
      %35 = dma.hbm_to_vmem [thread:$0]  %s1, 2048, %s30, [#allocation6], 128, 128, 8
    $region9: #{tpu_custom_call.1} parent=1 // pred_fallthru
      _
    // Predicated region
    $region10: #{tpu_custom_call.1} parent=1 // pred_check
      _
    $region11: #{tpu_custom_call.1} parent=1 // pred_check_branch
      %37 = sbr.rel (0) target = $region13
    $region12: #{tpu_custom_call.1} parent=1 // pred_region
      %s39 = ssub.s32 2048, 2048
      %40 = vsyncadd [#allocation6], %s39
      %s41 = sshll.u32 [#allocation7], 4
      %s42 = int_to_ptr.vmem [resolvable:$true] %s41
      %47 = dma.hbm_to_vmem [thread:$0]  %s2, 2048, %s42, [#allocation6], 128, 128, 8
    $region13: #{tpu_custom_call.1} parent=1 // pred_fallthru
      _
    // Predicated region
    $region14: #{tpu_custom_call.1} parent=1 // pred_check
      _
    $region15: #{tpu_custom_call.1} parent=1 // pred_check_branch
      %49 = sbr.rel (0) target = $region17
    $region16: #{tpu_custom_call.1} parent=1 // pred_region
      _
    $region17: #{tpu_custom_call.1} parent=1 // pred_fallthru
      _
    // Predicated region
    $region18: #{tpu_custom_call.1} parent=1 // pred_check
      _
    $region19: #{tpu_custom_call.1} parent=1 // pred_check_branch
      %51 = sbr.rel (0) target = $region21
    $region20: #{tpu_custom_call.1} parent=1 // pred_region
      %52 = dma.done [#allocation3], 1024
    $region21: #{tpu_custom_call.1} parent=1 // pred_fallthru
      _
    // Predicated region
    $region22: #{tpu_custom_call.1} parent=1 // pred_check
      _
    $region23: #{tpu_custom_call.1} parent=1 // pred_check_branch
      %54 = sbr.rel (0) target = $region25
    $region24: #{tpu_custom_call.1} parent=1 // pred_region
      %55 = dma.done [#allocation6], 2048
    $region25: #{tpu_custom_call.1} parent=1 // pred_fallthru
      _
    // Predicated region
    $region26: #{tpu_custom_call.1} parent=1 // pred_check
      _
    $region27: #{tpu_custom_call.1} parent=1 // pred_check_branch
      %57 = sbr.rel (0) target = $region29
    $region28: #{tpu_custom_call.1} parent=1 // pred_region
      %58 = dma.done [#allocation6], 2048
    $region29: #{tpu_custom_call.1} parent=1 // pred_fallthru
      _
    %v59 = vld [vmem:[#allocation2] sm:$0xff]
    %v60 = vld [vmem:[#allocation2 + $0x8] sm:$0xff]
    %v61 = vld [vmem:[#allocation2 + $0x10] sm:$0xff]
    %v62 = vld [vmem:[#allocation2 + $0x18] sm:$0xff]
    %v63 = vld [vmem:[#allocation2 + $0x20] sm:$0xff]
    %v64 = vld [vmem:[#allocation2 + $0x28] sm:$0xff]
    %v65 = vld [vmem:[#allocation2 + $0x30] sm:$0xff]
    %v66 = vld [vmem:[#allocation2 + $0x38] sm:$0xff]
    %v67 = vld [vmem:[#allocation5] sm:$0xff]
    %v68 = vld [vmem:[#allocation5 + $0x8] sm:$0xff]
    %v69 = vld [vmem:[#allocation5 + $0x10] sm:$0xff]
    %v70 = vld [vmem:[#allocation5 + $0x18] sm:$0xff]
    %v71 = vld [vmem:[#allocation5 + $0x20] sm:$0xff]
    %v72 = vld [vmem:[#allocation5 + $0x28] sm:$0xff]
    %v73 = vld [vmem:[#allocation5 + $0x30] sm:$0xff]
    %v74 = vld [vmem:[#allocation5 + $0x38] sm:$0xff]
    %v75 = vld [vmem:[#allocation5 + $0x40] sm:$0xff]
    %v76 = vld [vmem:[#allocation5 + $0x48] sm:$0xff]
    %v77 = vld [vmem:[#allocation5 + $0x50] sm:$0xff]
    %v78 = vld [vmem:[#allocation5 + $0x58] sm:$0xff]
    %v79 = vld [vmem:[#allocation5 + $0x60] sm:$0xff]
    %v80 = vld [vmem:[#allocation5 + $0x68] sm:$0xff]
    %v81 = vld [vmem:[#allocation5 + $0x70] sm:$0xff]
    %v82 = vld [vmem:[#allocation5 + $0x78] sm:$0xff]
    %v83 = vld [vmem:[%s3] sm:$0x1]
    %v85 = vlaneseq
    %v86 = vshrl.u32 %v85, 7
    %v87 = vsub.s32 0, %v86
    %v88 = vrot.slane %v83, %v87
    %90 = vmatprep.subr.mxu0 0.0
    %91 = vmatpush1.msra.mxu0 %v67
    %92 = vmatprep.subr.mxu0 0.0
    %93 = vmatpush1.msra.mxu0 %v68
    %94 = vmatprep.subr.mxu0 0.0
    %95 = vmatpush1.msra.mxu0 %v69
    %96 = vmatprep.subr.mxu0 0.0
    %97 = vmatpush1.msra.mxu0 %v70
    %98 = vmatprep.subr.mxu0 0.0
    %99 = vmatpush1.msra.mxu0 %v71
    %100 = vmatprep.subr.mxu0 0.0
    %101 = vmatpush1.msra.mxu0 %v72
    %102 = vmatprep.subr.mxu0 0.0
    %103 = vmatpush1.msra.mxu0 %v73
    %104 = vmatprep.subr.mxu0 0.0
    %105 = vmatpush1.msra.mxu0 %v74
    %106 = vmatprep.subr.mxu0 0.0
    %107 = vmatpush1.msra.mxu0 %v75
    %108 = vmatprep.subr.mxu0 0.0
    %109 = vmatpush1.msra.mxu0 %v76
    %110 = vmatprep.subr.mxu0 0.0
    %111 = vmatpush1.msra.mxu0 %v77
    %112 = vmatprep.subr.mxu0 0.0
    %113 = vmatpush1.msra.mxu0 %v78
    %114 = vmatprep.subr.mxu0 0.0
    %115 = vmatpush1.msra.mxu0 %v79
    %116 = vmatprep.subr.mxu0 0.0
    %117 = vmatpush1.msra.mxu0 %v80
    %118 = vmatprep.subr.mxu0 0.0
    %119 = vmatpush1.msra.mxu0 %v81
    %120 = vmatprep.subr.mxu0 0.0
    %121 = vmatpush1.msra.mxu0 %v82
    %122 = vmatprep.subr.mxu0 0.0
    %123 = vmatpush1.msra.mxu0 0.0
    %124 = vmatprep.subr.mxu0 0.0
    %125 = vmatpush1.msra.mxu0 0.0
    %126 = vmatprep.subr.mxu0 0.0
    %127 = vmatpush1.msra.mxu0 0.0
    %128 = vmatprep.subr.mxu0 0.0
    %129 = vmatpush1.msra.mxu0 0.0
    %130 = vmatprep.subr.mxu0 0.0
    %131 = vmatpush1.msra.mxu0 0.0
    %132 = vmatprep.subr.mxu0 0.0
    %133 = vmatpush1.msra.mxu0 0.0
    %134 = vmatprep.subr.mxu0 0.0
    %135 = vmatpush1.msra.mxu0 0.0
    %136 = vmatprep.subr.mxu0 0.0
    %137 = vmatpush1.msra.mxu0 0.0
    %138 = vmatprep.subr.mxu0 0.0
    %139 = vmatpush1.msra.mxu0 0.0
    %140 = vmatprep.subr.mxu0 0.0
    %141 = vmatpush1.msra.mxu0 0.0
    %142 = vmatprep.subr.mxu0 0.0
    %143 = vmatpush1.msra.mxu0 0.0
    %144 = vmatprep.subr.mxu0 0.0
    %145 = vmatpush1.msra.mxu0 0.0
    %146 = vmatprep.subr.mxu0 0.0
    %147 = vmatpush1.msra.mxu0 0.0
    %148 = vmatprep.subr.mxu0 0.0
    %149 = vmatpush1.msra.mxu0 0.0
    %150 = vmatprep.subr.mxu0 0.0
    %151 = vmatpush1.msra.mxu0 0.0
    %152 = vmatprep.subr.mxu0 0.0
    %153 = vmatpush1.msra.mxu0 0.0
    %154 = vmatprep.mubr.f32.mxu0 0.0
    %155 = vmatmul.mubr.f32.gmra.mrb[0].mxu0 %v59
    %v156 = vpop.f32.mrb[0].mxu0
    %v157 = vadd.f32 %v88, %v156
    %v158 = vpop.f32.mrb[0].mxu0
    %159 = vmatprep.mubr.f32.mxu0 0.0
    %160 = vmatmul.mubr.f32.gmra.mrb[0].mxu0 %v60
    %v161 = vpop.f32.mrb[0].mxu0
    %v162 = vadd.f32 %v88, %v161
    %v163 = vpop.f32.mrb[0].mxu0
    %164 = vmatprep.mubr.f32.mxu0 0.0
    %165 = vmatmul.mubr.f32.gmra.mrb[0].mxu0 %v61
    %v166 = vpop.f32.mrb[0].mxu0
    %v167 = vadd.f32 %v88, %v166
    %v168 = vpop.f32.mrb[0].mxu0
    %169 = vmatprep.mubr.f32.mxu0 0.0
    %170 = vmatmul.mubr.f32.gmra.mrb[0].mxu0 %v62
    %v171 = vpop.f32.mrb[0].mxu0
    %v172 = vadd.f32 %v88, %v171
    %v173 = vpop.f32.mrb[0].mxu0
    %174 = vmatprep.mubr.f32.mxu0 0.0
    %175 = vmatmul.mubr.f32.gmra.mrb[0].mxu0 %v63
    %v176 = vpop.f32.mrb[0].mxu0
    %v177 = vadd.f32 %v88, %v176
    %v178 = vpop.f32.mrb[0].mxu0
    %179 = vmatprep.mubr.f32.mxu0 0.0
    %180 = vmatmul.mubr.f32.gmra.mrb[0].mxu0 %v64
    %v181 = vpop.f32.mrb[0].mxu0
    %v182 = vadd.f32 %v88, %v181
    %v183 = vpop.f32.mrb[0].mxu0
    %184 = vmatprep.mubr.f32.mxu0 0.0
    %185 = vmatmul.mubr.f32.gmra.mrb[0].mxu0 %v65
    %v186 = vpop.f32.mrb[0].mxu0
    %v187 = vadd.f32 %v88, %v186
    %v188 = vpop.f32.mrb[0].mxu0
    %189 = vmatprep.mubr.f32.mxu0 0.0
    %190 = vmatmul.mubr.f32.gmra.mrb[0].mxu0 %v66
    %v191 = vpop.f32.mrb[0].mxu0
    %v192 = vadd.f32 %v88, %v191
    %v193 = vpop.f32.mrb[0].mxu0
    %194 = vdwg.mxu0
    %v195 = vmul.f32 %v157, 0.5
    %v196 = vmul.f32 %v162, 0.5
    %v197 = vmul.f32 %v167, 0.5
    %v198 = vmul.f32 %v172, 0.5
    %v199 = vmul.f32 %v177, 0.5
    %v200 = vmul.f32 %v182, 0.5
    %v201 = vmul.f32 %v187, 0.5
    %v202 = vmul.f32 %v192, 0.5
    %v203 = vmul.f32 %v157, 0.70710677
    %v204 = vmul.f32 %v162, 0.70710677
    %v205 = vmul.f32 %v167, 0.70710677
    %v206 = vmul.f32 %v172, 0.70710677
    %v207 = vmul.f32 %v177, 0.70710677
    %v208 = vmul.f32 %v182, 0.70710677
    %v209 = vmul.f32 %v187, 0.70710677
    %v210 = vmul.f32 %v192, 0.70710677
    %v211 = verf.f32.pop %v203
    %v212 = verf.f32.pop %v204
    %v213 = verf.f32.pop %v205
    %v214 = verf.f32.pop %v206
    %v215 = verf.f32.pop %v207
    %v216 = verf.f32.pop %v208
    %v217 = verf.f32.pop %v209
    %v218 = verf.f32.pop %v210
    %v219 = vadd.f32 %v211, 1.0
    %v220 = vadd.f32 %v212, 1.0
    %v221 = vadd.f32 %v213, 1.0
    %v222 = vadd.f32 %v214, 1.0
    %v223 = vadd.f32 %v215, 1.0
    %v224 = vadd.f32 %v216, 1.0
    %v225 = vadd.f32 %v217, 1.0
    %v226 = vadd.f32 %v218, 1.0
    %v227 = vmul.f32 %v195, %v219
    %v228 = vmul.f32 %v196, %v220
    %v229 = vmul.f32 %v197, %v221
    %v230 = vmul.f32 %v198, %v222
    %v231 = vmul.f32 %v199, %v223
    %v232 = vmul.f32 %v200, %v224
    %v233 = vmul.f32 %v201, %v225
    %v234 = vmul.f32 %v202, %v226
    %v235 = vld [vmem:[#allocation7] sm:$0xff]
    %v236 = vld [vmem:[#allocation7 + $0x8] sm:$0xff]
    %v237 = vld [vmem:[#allocation7 + $0x10] sm:$0xff]
    %v238 = vld [vmem:[#allocation7 + $0x18] sm:$0xff]
    %v239 = vld [vmem:[#allocation7 + $0x20] sm:$0xff]
    %v240 = vld [vmem:[#allocation7 + $0x28] sm:$0xff]
    %v241 = vld [vmem:[#allocation7 + $0x30] sm:$0xff]
    %v242 = vld [vmem:[#allocation7 + $0x38] sm:$0xff]
    %v243 = vld [vmem:[#allocation7 + $0x40] sm:$0xff]
    %v244 = vld [vmem:[#allocation7 + $0x48] sm:$0xff]
    %v245 = vld [vmem:[#allocation7 + $0x50] sm:$0xff]
    %v246 = vld [vmem:[#allocation7 + $0x58] sm:$0xff]
    %v247 = vld [vmem:[#allocation7 + $0x60] sm:$0xff]
    %v248 = vld [vmem:[#allocation7 + $0x68] sm:$0xff]
    %v249 = vld [vmem:[#allocation7 + $0x70] sm:$0xff]
    %v250 = vld [vmem:[#allocation7 + $0x78] sm:$0xff]
    %v251 = vld [vmem:[%s3 + $0x1] sm:$0x1]
    %v253 = vlaneseq
    %v254 = vshrl.u32 %v253, 7
    %v255 = vsub.s32 0, %v254
    %v256 = vrot.slane %v251, %v255
    %258 = vmatprep.subr.mxu0 0.0
    %259 = vmatpush1.msra.mxu0 %v235
    %260 = vmatprep.subr.mxu0 0.0
    %261 = vmatpush1.msra.mxu0 %v236
    %262 = vmatprep.subr.mxu0 0.0
    %263 = vmatpush1.msra.mxu0 %v237
    %264 = vmatprep.subr.mxu0 0.0
    %265 = vmatpush1.msra.mxu0 %v238
    %266 = vmatprep.subr.mxu0 0.0
    %267 = vmatpush1.msra.mxu0 %v239
    %268 = vmatprep.subr.mxu0 0.0
    %269 = vmatpush1.msra.mxu0 %v240
    %270 = vmatprep.subr.mxu0 0.0
    %271 = vmatpush1.msra.mxu0 %v241
    %272 = vmatprep.subr.mxu0 0.0
    %273 = vmatpush1.msra.mxu0 %v242
    %274 = vmatprep.subr.mxu0 0.0
    %275 = vmatpush1.msra.mxu0 %v243
    %276 = vmatprep.subr.mxu0 0.0
    %277 = vmatpush1.msra.mxu0 %v244
    %278 = vmatprep.subr.mxu0 0.0
    %279 = vmatpush1.msra.mxu0 %v245
    %280 = vmatprep.subr.mxu0 0.0
    %281 = vmatpush1.msra.mxu0 %v246
    %282 = vmatprep.subr.mxu0 0.0
    %283 = vmatpush1.msra.mxu0 %v247
    %284 = vmatprep.subr.mxu0 0.0
    %285 = vmatpush1.msra.mxu0 %v248
    %286 = vmatprep.subr.mxu0 0.0
    %287 = vmatpush1.msra.mxu0 %v249
    %288 = vmatprep.subr.mxu0 0.0
    %289 = vmatpush1.msra.mxu0 %v250
    %290 = vmatprep.subr.mxu0 0.0
    %291 = vmatpush1.msra.mxu0 0.0
    %292 = vmatprep.subr.mxu0 0.0
    %293 = vmatpush1.msra.mxu0 0.0
    %294 = vmatprep.subr.mxu0 0.0
    %295 = vmatpush1.msra.mxu0 0.0
    %296 = vmatprep.subr.mxu0 0.0
    %297 = vmatpush1.msra.mxu0 0.0
    %298 = vmatprep.subr.mxu0 0.0
    %299 = vmatpush1.msra.mxu0 0.0
    %300 = vmatprep.subr.mxu0 0.0
    %301 = vmatpush1.msra.mxu0 0.0
    %302 = vmatprep.subr.mxu0 0.0
    %303 = vmatpush1.msra.mxu0 0.0
    %304 = vmatprep.subr.mxu0 0.0
    %305 = vmatpush1.msra.mxu0 0.0
    %306 = vmatprep.subr.mxu0 0.0
    %307 = vmatpush1.msra.mxu0 0.0
    %308 = vmatprep.subr.mxu0 0.0
    %309 = vmatpush1.msra.mxu0 0.0
    %310 = vmatprep.subr.mxu0 0.0
    %311 = vmatpush1.msra.mxu0 0.0
    %312 = vmatprep.subr.mxu0 0.0
    %313 = vmatpush1.msra.mxu0 0.0
    %314 = vmatprep.subr.mxu0 0.0
    %315 = vmatpush1.msra.mxu0 0.0
    %316 = vmatprep.subr.mxu0 0.0
    %317 = vmatpush1.msra.mxu0 0.0
    %318 = vmatprep.subr.mxu0 0.0
    %319 = vmatpush1.msra.mxu0 0.0
    %320 = vmatprep.subr.mxu0 0.0
    %321 = vmatpush1.msra.mxu0 0.0
    %322 = vmatprep.mubr.f32.mxu0 0.0
    %323 = vmatmul.mubr.f32.gmra.mrb[0].mxu0 %v227
    %v324 = vpop.f32.mrb[0].mxu0
    %v325 = vadd.f32 %v256, %v324
    %v326 = vpop.f32.mrb[0].mxu0
    %327 = vmatprep.mubr.f32.mxu0 0.0
    %328 = vmatmul.mubr.f32.gmra.mrb[0].mxu0 %v228
    %v329 = vpop.f32.mrb[0].mxu0
    %v330 = vadd.f32 %v256, %v329
    %v331 = vpop.f32.mrb[0].mxu0
    %332 = vmatprep.mubr.f32.mxu0 0.0
    %333 = vmatmul.mubr.f32.gmra.mrb[0].mxu0 %v229
    %v334 = vpop.f32.mrb[0].mxu0
    %v335 = vadd.f32 %v256, %v334
    %v336 = vpop.f32.mrb[0].mxu0
    %337 = vmatprep.mubr.f32.mxu0 0.0
    %338 = vmatmul.mubr.f32.gmra.mrb[0].mxu0 %v230
    %v339 = vpop.f32.mrb[0].mxu0
    %v340 = vadd.f32 %v256, %v339
    %v341 = vpop.f32.mrb[0].mxu0
    %342 = vmatprep.mubr.f32.mxu0 0.0
    %343 = vmatmul.mubr.f32.gmra.mrb[0].mxu0 %v231
    %v344 = vpop.f32.mrb[0].mxu0
    %v345 = vadd.f32 %v256, %v344
    %v346 = vpop.f32.mrb[0].mxu0
    %347 = vmatprep.mubr.f32.mxu0 0.0
    %348 = vmatmul.mubr.f32.gmra.mrb[0].mxu0 %v232
    %v349 = vpop.f32.mrb[0].mxu0
    %v350 = vadd.f32 %v256, %v349
    %v351 = vpop.f32.mrb[0].mxu0
    %352 = vmatprep.mubr.f32.mxu0 0.0
    %353 = vmatmul.mubr.f32.gmra.mrb[0].mxu0 %v233
    %v354 = vpop.f32.mrb[0].mxu0
    %v355 = vadd.f32 %v256, %v354
    %v356 = vpop.f32.mrb[0].mxu0
    %357 = vmatprep.mubr.f32.mxu0 0.0
    %358 = vmatmul.mubr.f32.gmra.mrb[0].mxu0 %v234
    %v359 = vpop.f32.mrb[0].mxu0
    %v360 = vadd.f32 %v256, %v359
    %v361 = vpop.f32.mrb[0].mxu0
    %362 = vdwg.mxu0
    %v363 = vlaneseq
    %v364 = vand.u32 %v363, 127
    %vm365 = vcmp.lt.s32.totalorder %v364, 8
    %v366 = vsel %vm365, %v325, -inf
    %v367 = vsel %vm365, %v330, -inf
    %v368 = vsel %vm365, %v335, -inf
    %v369 = vsel %vm365, %v340, -inf
    %v370 = vsel %vm365, %v345, -inf
    %v371 = vsel %vm365, %v350, -inf
    %v372 = vsel %vm365, %v355, -inf
    %v373 = vsel %vm365, %v360, -inf
    %374 = vmax.xlane.f32.xlu0 %v366
    %v375 = vpop.xlane.xlu0 %374
    %376 = vmax.xlane.f32.xlu0 %v367
    %v377 = vpop.xlane.xlu0 %376
    %378 = vmax.xlane.f32.xlu0 %v368
    %v379 = vpop.xlane.xlu0 %378
    %380 = vmax.xlane.f32.xlu0 %v369
    %v381 = vpop.xlane.xlu0 %380
    %382 = vmax.xlane.f32.xlu0 %v370
    %v383 = vpop.xlane.xlu0 %382
    %384 = vmax.xlane.f32.xlu0 %v371
    %v385 = vpop.xlane.xlu0 %384
    %386 = vmax.xlane.f32.xlu0 %v372
    %v387 = vpop.xlane.xlu0 %386
    %388 = vmax.xlane.f32.xlu0 %v373
    %v389 = vpop.xlane.xlu0 %388
    %v390 = vsub.f32 %v366, %v375
    %v391 = vsub.f32 %v367, %v377
    %v392 = vsub.f32 %v368, %v379
    %v393 = vsub.f32 %v369, %v381
    %v394 = vsub.f32 %v370, %v383
    %v395 = vsub.f32 %v371, %v385
    %v396 = vsub.f32 %v372, %v387
    %v397 = vsub.f32 %v373, %v389
    %v398 = vmul.f32 %v390, 1.442695
    %v399 = vpow.pop %v398
    %v400 = vmul.f32 %v391, 1.442695
    %v401 = vpow.pop %v400
    %v402 = vmul.f32 %v392, 1.442695
    %v403 = vpow.pop %v402
    %v404 = vmul.f32 %v393, 1.442695
    %v405 = vpow.pop %v404
    %v406 = vmul.f32 %v394, 1.442695
    %v407 = vpow.pop %v406
    %v408 = vmul.f32 %v395, 1.442695
    %v409 = vpow.pop %v408
    %v410 = vmul.f32 %v396, 1.442695
    %v411 = vpow.pop %v410
    %v412 = vmul.f32 %v397, 1.442695
    %v413 = vpow.pop %v412
    %414 = vadd.xlane.f32.xlu0 %v399
    %v415 = vpop.xlane.xlu0 %414
    %416 = vadd.xlane.f32.xlu0 %v401
    %v417 = vpop.xlane.xlu0 %416
    %418 = vadd.xlane.f32.xlu0 %v403
    %v419 = vpop.xlane.xlu0 %418
    %420 = vadd.xlane.f32.xlu0 %v405
    %v421 = vpop.xlane.xlu0 %420
    %422 = vadd.xlane.f32.xlu0 %v407
    %v423 = vpop.xlane.xlu0 %422
    %424 = vadd.xlane.f32.xlu0 %v409
    %v425 = vpop.xlane.xlu0 %424
    %426 = vadd.xlane.f32.xlu0 %v411
    %v427 = vpop.xlane.xlu0 %426
    %428 = vadd.xlane.f32.xlu0 %v413
    %v429 = vpop.xlane.xlu0 %428
    %v430 = vrcp.pop %v415
    %v431 = vrcp.pop %v417
    %v432 = vrcp.pop %v419
    %v433 = vrcp.pop %v421
    %v434 = vrcp.pop %v423
    %v435 = vrcp.pop %v425
    %v436 = vrcp.pop %v427
    %v437 = vrcp.pop %v429
    %v438 = vmul.f32 %v399, %v430
    %v439 = vmul.f32 %v401, %v431
    %v440 = vmul.f32 %v403, %v432
    %v441 = vmul.f32 %v405, %v433
    %v442 = vmul.f32 %v407, %v434
    %v443 = vmul.f32 %v409, %v435
    %v444 = vmul.f32 %v411, %v436
    %v445 = vmul.f32 %v413, %v437
    %v446 = vsel %vm365, %v438, %v325
    %v447 = vsel %vm365, %v439, %v330
    %v448 = vsel %vm365, %v440, %v335
    %v449 = vsel %vm365, %v441, %v340
    %v450 = vsel %vm365, %v442, %v345
    %v451 = vsel %vm365, %v443, %v350
    %v452 = vsel %vm365, %v444, %v355
    %v453 = vsel %vm365, %v445, %v360
    %454 = vst [vmem:[#allocation8] sm:$0xff] %v446
    %455 = vst [vmem:[#allocation8 + $0x8] sm:$0xff] %v447
    %456 = vst [vmem:[#allocation8 + $0x10] sm:$0xff] %v448
    %457 = vst [vmem:[#allocation8 + $0x18] sm:$0xff] %v449
    %458 = vst [vmem:[#allocation8 + $0x20] sm:$0xff] %v450
    %459 = vst [vmem:[#allocation8 + $0x28] sm:$0xff] %v451
    %460 = vst [vmem:[#allocation8 + $0x30] sm:$0xff] %v452
    %461 = vst [vmem:[#allocation8 + $0x38] sm:$0xff] %v453
    // Predicated region
    $region30: #{tpu_custom_call.1} parent=1 // pred_check
      _
    $region31: #{tpu_custom_call.1} parent=1 // pred_check_branch
      %463 = sbr.rel (0) target = $region33
    $region32: #{tpu_custom_call.1} parent=1 // pred_region
      %s465 = ssub.s32 1024, 1024
      %466 = vsyncadd [#allocation4], %s465
      %s467 = sshll.u32 [#allocation8], 4
      %s468 = int_to_ptr.vmem [resolvable:$true] %s467
      %473 = dma.vmem_to_hbm [thread:$0]  %s468, 1024, %s4, [#allocation4], 128, 128, 8
    $region33: #{tpu_custom_call.1} parent=1 // pred_fallthru
      _
    // Predicated region
    $region34: #{tpu_custom_call.1} parent=1 // pred_check
      _
    $region35: #{tpu_custom_call.1} parent=1 // pred_check_branch
      %475 = sbr.rel (0) target = $region37
    $region36: #{tpu_custom_call.1} parent=1 // pred_region
      %476 = dma.done [#allocation4], 1024
    $region37: #{tpu_custom_call.1} parent=1 // pred_fallthru
      _
    %477 = vsyncpa [#allocation3], 1
    %478 = vsyncpa [#allocation6], 1
    %479 = vsyncpa [#allocation4], 1

</llo_original>
